<compile_context>
chip_gen: v6e
topology: v6e:2x2x1
jax: 0.10.0
libtpu: 0.0.40
codegen_flags: <defaults>
</compile_context>

<pallas_src>
import functools

import jax
import jax.numpy as jnp
from jax.experimental import pallas as pl
from jax.experimental.pallas import tpu as pltpu


def _round_up(x, m):
    return ((x + m - 1) // m) * m


def _make_kernel(n_linear, n_users, n_movies):
    """Feature-major kernel body for a model with `n_linear` Linear layers (>=1)."""

    def kernel(u_idx_ref, m_idx_ref, u_tab_ref, m_tab_ref,
               w0u_ref, w0m_ref, b0_ref, *rest):
        wb_refs = rest[:-1]          # w1^T, b1^T, ..., w_{L-1}^T, b_{L-1}^T
        out_ref = rest[-1]
        tile_b = u_idx_ref.shape[1]

        # ---- Batched embedding gather: bf16 one-hot matmul on the MXU. ----
        # One-hots are built transposed ([table_rows, TILE_B]) so the gathered
        # embeddings come out feature-major and the batch stays on lanes.
        # Out-of-range / padded indices simply yield a zero embedding.
        u_oh = (u_idx_ref[...] == jax.lax.broadcasted_iota(
            jnp.int32, (n_users, tile_b), 0)).astype(jnp.bfloat16)
        m_oh = (m_idx_ref[...] == jax.lax.broadcasted_iota(
            jnp.int32, (n_movies, tile_b), 0)).astype(jnp.bfloat16)
        x_u = jnp.dot(u_tab_ref[...], u_oh, preferred_element_type=jnp.float32)
        x_m = jnp.dot(m_tab_ref[...], m_oh, preferred_element_type=jnp.float32)

        # ---- First Linear via split weight (== concat along features). ----
        h = (jnp.dot(w0u_ref[...], x_u.astype(jnp.bfloat16),
                     preferred_element_type=jnp.float32)
             + jnp.dot(w0m_ref[...], x_m.astype(jnp.bfloat16),
                       preferred_element_type=jnp.float32)
             + b0_ref[...])
        h = jnp.maximum(h, 0.0)

        # ---- Remaining Linear (+ ReLU) layers.  Dropout == identity (eval). ----
        for l in range(n_linear - 1):
            w = wb_refs[2 * l][...]          # bf16 [out, in]
            b = wb_refs[2 * l + 1][...]      # f32  [out, 1]
            h = jnp.dot(w, h.astype(jnp.bfloat16),
                        preferred_element_type=jnp.float32) + b
            h = jnp.maximum(h, 0.0)

        # h is (1, TILE_B): lane-dense store (no masked single-lane vst's).
        out_ref[...] = h.astype(out_ref.dtype)

    return kernel


def prepare_params(params):
    """One-time host-side prep: transpose to feature-major, cast to bf16."""
    u_tab = params["user_embed"]
    m_tab = params["movie_embed"]
    layers = params["layers"]
    n_latents = u_tab.shape[1]

    w0, b0 = layers[0]                                   # [2*nl, out0], [1, out0]
    prepared = {
        "u_tab_t": u_tab.T.astype(jnp.bfloat16),         # [n_latents, n_users]
        "m_tab_t": m_tab.T.astype(jnp.bfloat16),         # [n_latents, n_movies]
        "w0u_t": w0[:n_latents].T.astype(jnp.bfloat16),  # [out0, n_latents]
        "w0m_t": w0[n_latents:].T.astype(jnp.bfloat16),  # [out0, n_latents]
        "b0_t": b0.T.astype(jnp.float32),                # [out0, 1]
        "wb": [],
    }
    for w, b in layers[1:]:
        prepared["wb"].append(w.T.astype(jnp.bfloat16))  # [out, in]
        prepared["wb"].append(b.T.astype(jnp.float32))   # [out, 1]
    return prepared


@functools.partial(jax.jit, static_argnames=("tile_b",))
def explicit_dlcrs_forward(users, movies, prepared, *, tile_b=512):
    u_tab_t = prepared["u_tab_t"]
    m_tab_t = prepared["m_tab_t"]
    n_latents, n_users = u_tab_t.shape
    n_movies = m_tab_t.shape[1]
    wb = list(prepared["wb"])
    n_linear = len(wb) // 2 + 1
    batch = users.shape[0]

    # --- Batch tiling: TILE_B is a multiple of 128 so the (1, TILE_B) blocks
    #     are lane-dense; cap TILE_B so the bf16 one-hot intermediates stay
    #     small (VMEM headroom on v7x's 64 MiB).
    tb = min(int(tile_b), _round_up(batch, 128))
    tb = max(128, _round_up(tb, 128))
    onehot_cap = max(
        128, ((8 * 1024 * 1024) // max(1, 2 * (n_users + n_movies))) // 128 * 128)
    tb = min(tb, onehot_cap)
    padded = _round_up(batch, tb)
    grid = (padded // tb,)

    # Indices as (1, padded) int32 rows; padding uses index 0 (a valid row) and
    # the padded outputs are sliced off below.
    u_idx = jnp.pad(users.astype(jnp.int32), (0, padded - batch)).reshape(1, padded)
    m_idx = jnp.pad(movies.astype(jnp.int32), (0, padded - batch)).reshape(1, padded)

    weight_inputs = [prepared["w0u_t"], prepared["w0m_t"], prepared["b0_t"]] + wb
    resident = [u_tab_t, m_tab_t] + weight_inputs

    # --- VMEM budget: derive the cap from the actual chip (fallback 64 MiB). ---
    resident_bytes = sum(int(a.size) * a.dtype.itemsize for a in resident)
    max_hidden = max(int(a.shape[0]) for a in weight_inputs)
    step_bytes = tb * (2 * (n_users + n_movies)                # bf16 one-hots
                       + 4 * (2 * n_latents + 2 * max_hidden)  # f32 intermediates
                       + 4 * 4)                                # idx + out blocks
    try:
        vmem_cap = int(pltpu.get_tpu_info().vmem_capacity_bytes)
    except Exception:
        vmem_cap = 64 * 1024 * 1024
    need = 2 * resident_bytes + 3 * step_bytes      # x2: default double-buffering
    vmem_budget = min(max(32 * 1024 * 1024, need), (vmem_cap * 9) // 10)
    assert need <= vmem_budget, (
        "tables/weights too large for the VMEM-resident path on this chip; "
        "switch to HBM-resident tables + DMA gather")

    const2 = lambda i: (0, 0)
    row_map = lambda i: (0, i)
    in_specs = [
        pl.BlockSpec((1, tb), row_map),           # user indices
        pl.BlockSpec((1, tb), row_map),           # movie indices
        pl.BlockSpec(u_tab_t.shape, const2),      # user table (bf16, transposed)
        pl.BlockSpec(m_tab_t.shape, const2),      # movie table (bf16, transposed)
    ] + [pl.BlockSpec(a.shape, const2) for a in weight_inputs]

    # Advisory cost estimate (compute-tiny, DMA-heavy on the first step).
    dims = [(2 * n_latents, int(prepared["w0u_t"].shape[0]))]
    for l in range(n_linear - 1):
        w = wb[2 * l]
        dims.append((int(w.shape[1]), int(w.shape[0])))
    layer_flops = sum(2 * din * dout for din, dout in dims)
    gather_flops = 2 * n_latents * (n_users + n_movies)
    cost = pl.CostEstimate(
        flops=int(padded * (gather_flops + layer_flops)),
        transcendentals=0,
        bytes_accessed=int(resident_bytes + 3 * padded * 4))

    out = pl.pallas_call(
        _make_kernel(n_linear, n_users, n_movies),
        out_shape=jax.ShapeDtypeStruct((1, padded), jnp.float32),
        grid=grid,
        in_specs=in_specs,
        out_specs=pl.BlockSpec((1, tb), row_map),
        compiler_params=pltpu.CompilerParams(
            dimension_semantics=("parallel",),
            vmem_limit_bytes=int(vmem_budget)),
        cost_estimate=cost,
    )(u_idx, m_idx, u_tab_t, m_tab_t, *weight_inputs)

    return out[0, :batch].reshape(batch, 1)


def init_params(key, n_users, n_movies, n_latents, n_layers):
    """Deterministic synthetic parameters matching the module's shapes.

    Linear weights are stored [in, out] (transposed vs PyTorch); biases [1, out].
    """
    n_linear = n_layers + 1
    keys = jax.random.split(key, 2 + 2 * n_linear)

    user_embed = jax.random.normal(keys[0], (n_users, n_latents), jnp.float32) * 0.1
    movie_embed = jax.random.normal(keys[1], (n_movies, n_latents), jnp.float32) * 0.1

    # Layer dims exactly as in the PyTorch __init__.
    dims = []
    in_size, out_size = 2 * n_latents, 50 * n_layers
    for _ in range(n_layers):
        dims.append((in_size, out_size))
        in_size = out_size
        out_size -= 50
    dims.append((50, 1))  # final Linear(50, 1)

    layers = []
    for i, (din, dout) in enumerate(dims):
        scale = 1.0 / (din ** 0.5)
        w = jax.random.uniform(keys[2 + 2 * i], (din, dout), jnp.float32, -scale, scale)
        b = jax.random.uniform(keys[3 + 2 * i], (1, dout), jnp.float32, -scale, scale)
        layers.append((w, b))

    return {"user_embed": user_embed, "movie_embed": movie_embed, "layers": layers}


def reference_forward(users, movies, params):
    """Pure-JAX f32 reference reproducing the PyTorch forward (eval mode).

    Note the PyTorch module applies ReLU after the final Linear(50, 1) too.
    """
    x = jnp.concatenate(
        [params["user_embed"][users], params["movie_embed"][movies]], axis=1
    )
    for w, b in params["layers"]:
        x = jnp.maximum(x @ w + b, 0.0)
    return x


if __name__ == "__main__":
    # Small, module-consistent shapes.
    n_users, n_movies = 100, 120
    n_latents, n_layers = 16, 2
    batch = 200   # not a multiple of tile_b -> exercises padding + a 2-step grid

    key = jax.random.PRNGKey(0)
    kp, ku, km = jax.random.split(key, 3)

    params = init_params(kp, n_users, n_movies, n_latents, n_layers)
    users = jax.random.randint(ku, (batch,), 0, n_users, dtype=jnp.int32)
    movies = jax.random.randint(km, (batch,), 0, n_movies, dtype=jnp.int32)

    # One-time weight prep (bf16 casts / transposes) hoisted out of the hot path.
    prepared = prepare_params(params)

    out = explicit_dlcrs_forward(users, movies, prepared, tile_b=128)
    out = jax.block_until_ready(out)

    ref = reference_forward(users, movies, params)
    assert out.shape == (batch, 1), out.shape
    # bf16 tables/weights (f32 accumulation) => slightly looser tolerance than f32.
    assert jnp.allclose(out, ref, rtol=5e-2, atol=2e-2), (
        float(jnp.max(jnp.abs(out - ref))))

    print("KERNEL_OK")
</pallas_src>

<mosaic_0001>
module attributes {stable_mosaic.version = 11 : i64} {
  func.func @kernel(%arg0: i32, %arg1: memref<1x128xi32, #tpu.memory_space<vmem>>, %arg2: memref<1x128xi32, #tpu.memory_space<vmem>>, %arg3: memref<16x100xbf16, #tpu.memory_space<vmem>>, %arg4: memref<16x120xbf16, #tpu.memory_space<vmem>>, %arg5: memref<100x16xbf16, #tpu.memory_space<vmem>>, %arg6: memref<100x16xbf16, #tpu.memory_space<vmem>>, %arg7: memref<100x1xf32, #tpu.memory_space<vmem>>, %arg8: memref<50x100xbf16, #tpu.memory_space<vmem>>, %arg9: memref<50x1xf32, #tpu.memory_space<vmem>>, %arg10: memref<1x50xbf16, #tpu.memory_space<vmem>>, %arg11: memref<1x1xf32, #tpu.memory_space<vmem>>, %arg12: memref<1x128xf32, #tpu.memory_space<vmem>>) attributes {dimension_semantics = [#tpu.dimension_semantics<parallel>], iteration_bounds = array<i64: 2>, scalar_prefetch = 0 : i64, scratch_operands = 0 : i64, tpu.core_type = #tpu.core_type<tc>, window_params = [{transform_indices = @transform_0, window_bounds = array<i64: 1, 128>}, {transform_indices = @transform_1, window_bounds = array<i64: 1, 128>}, {pipeline_mode = #tpu.pipeline_mode<synchronous>, transform_indices = @transform_2, window_bounds = array<i64: 16, 100>}, {pipeline_mode = #tpu.pipeline_mode<synchronous>, transform_indices = @transform_3, window_bounds = array<i64: 16, 120>}, {pipeline_mode = #tpu.pipeline_mode<synchronous>, transform_indices = @transform_4, window_bounds = array<i64: 100, 16>}, {pipeline_mode = #tpu.pipeline_mode<synchronous>, transform_indices = @transform_5, window_bounds = array<i64: 100, 16>}, {pipeline_mode = #tpu.pipeline_mode<synchronous>, transform_indices = @transform_6, window_bounds = array<i64: 100, 1>}, {pipeline_mode = #tpu.pipeline_mode<synchronous>, transform_indices = @transform_7, window_bounds = array<i64: 50, 100>}, {pipeline_mode = #tpu.pipeline_mode<synchronous>, transform_indices = @transform_8, window_bounds = array<i64: 50, 1>}, {pipeline_mode = #tpu.pipeline_mode<synchronous>, transform_indices = @transform_9, window_bounds = array<i64: 1, 50>}, {pipeline_mode = #tpu.pipeline_mode<synchronous>, transform_indices = @transform_10, window_bounds = array<i64: 1, 1>}, {transform_indices = @transform_11, window_bounds = array<i64: 1, 128>}]} {
    %c0 = arith.constant 0 : index
    %c0_0 = arith.constant 0 : index
    %0 = vector.load %arg1[%c0, %c0_0] : memref<1x128xi32, #tpu.memory_space<vmem>>, vector<1x128xi32>
    %1 = tpu.iota {dimensions = array<i32: 0>} : vector<100x128xi32>
    %2 = vector.broadcast %0 : vector<1x128xi32> to vector<100x128xi32>
    %3 = arith.cmpi eq, %2, %1 : vector<100x128xi32>
    %4 = arith.extui %3 : vector<100x128xi1> to vector<100x128xi32>
    %5 = arith.sitofp %4 : vector<100x128xi32> to vector<100x128xf32>
    %6 = arith.truncf %5 : vector<100x128xf32> to vector<100x128xbf16>
    %c0_1 = arith.constant 0 : index
    %c0_2 = arith.constant 0 : index
    %7 = vector.load %arg2[%c0_1, %c0_2] : memref<1x128xi32, #tpu.memory_space<vmem>>, vector<1x128xi32>
    %8 = tpu.iota {dimensions = array<i32: 0>} : vector<120x128xi32>
    %9 = vector.broadcast %7 : vector<1x128xi32> to vector<120x128xi32>
    %10 = arith.cmpi eq, %9, %8 : vector<120x128xi32>
    %11 = arith.extui %10 : vector<120x128xi1> to vector<120x128xi32>
    %12 = arith.sitofp %11 : vector<120x128xi32> to vector<120x128xf32>
    %13 = arith.truncf %12 : vector<120x128xf32> to vector<120x128xbf16>
    %c0_3 = arith.constant 0 : index
    %c0_4 = arith.constant 0 : index
    %14 = vector.load %arg3[%c0_3, %c0_4] : memref<16x100xbf16, #tpu.memory_space<vmem>>, vector<16x100xbf16>
    %cst = arith.constant dense<0.000000e+00> : vector<16x128xf32>
    %15 = tpu.matmul %14, %6, %cst {dimension_numbers = #tpu.dot_dimension_numbers<[1], [0], [0], [1], [0, 0, 1, 1], [], []>} : vector<16x100xbf16>, vector<100x128xbf16>, vector<16x128xf32> -> vector<16x128xf32>
    %c0_5 = arith.constant 0 : index
    %c0_6 = arith.constant 0 : index
    %16 = vector.load %arg4[%c0_5, %c0_6] : memref<16x120xbf16, #tpu.memory_space<vmem>>, vector<16x120xbf16>
    %cst_7 = arith.constant dense<0.000000e+00> : vector<16x128xf32>
    %17 = tpu.matmul %16, %13, %cst_7 {dimension_numbers = #tpu.dot_dimension_numbers<[1], [0], [0], [1], [0, 0, 1, 1], [], []>} : vector<16x120xbf16>, vector<120x128xbf16>, vector<16x128xf32> -> vector<16x128xf32>
    %c0_8 = arith.constant 0 : index
    %c0_9 = arith.constant 0 : index
    %18 = vector.load %arg5[%c0_8, %c0_9] : memref<100x16xbf16, #tpu.memory_space<vmem>>, vector<100x16xbf16>
    %19 = arith.truncf %15 : vector<16x128xf32> to vector<16x128xbf16>
    %cst_10 = arith.constant dense<0.000000e+00> : vector<100x128xf32>
    %20 = tpu.matmul %18, %19, %cst_10 {dimension_numbers = #tpu.dot_dimension_numbers<[1], [0], [0], [1], [0, 0, 1, 1], [], []>} : vector<100x16xbf16>, vector<16x128xbf16>, vector<100x128xf32> -> vector<100x128xf32>
    %c0_11 = arith.constant 0 : index
    %c0_12 = arith.constant 0 : index
    %21 = vector.load %arg6[%c0_11, %c0_12] : memref<100x16xbf16, #tpu.memory_space<vmem>>, vector<100x16xbf16>
    %22 = arith.truncf %17 : vector<16x128xf32> to vector<16x128xbf16>
    %cst_13 = arith.constant dense<0.000000e+00> : vector<100x128xf32>
    %23 = tpu.matmul %21, %22, %cst_13 {dimension_numbers = #tpu.dot_dimension_numbers<[1], [0], [0], [1], [0, 0, 1, 1], [], []>} : vector<100x16xbf16>, vector<16x128xbf16>, vector<100x128xf32> -> vector<100x128xf32>
    %24 = arith.addf %20, %23 : vector<100x128xf32>
    %c0_14 = arith.constant 0 : index
    %c0_15 = arith.constant 0 : index
    %25 = vector.load %arg7[%c0_14, %c0_15] : memref<100x1xf32, #tpu.memory_space<vmem>>, vector<100x1xf32>
    %26 = vector.broadcast %25 : vector<100x1xf32> to vector<100x128xf32>
    %27 = arith.addf %24, %26 : vector<100x128xf32>
    %cst_16 = arith.constant 0.000000e+00 : f32
    %28 = vector.broadcast %cst_16 : f32 to vector<100x128xf32>
    %29 = arith.maximumf %27, %28 : vector<100x128xf32>
    %c0_17 = arith.constant 0 : index
    %c0_18 = arith.constant 0 : index
    %30 = vector.load %arg8[%c0_17, %c0_18] : memref<50x100xbf16, #tpu.memory_space<vmem>>, vector<50x100xbf16>
    %c0_19 = arith.constant 0 : index
    %c0_20 = arith.constant 0 : index
    %31 = vector.load %arg9[%c0_19, %c0_20] : memref<50x1xf32, #tpu.memory_space<vmem>>, vector<50x1xf32>
    %32 = arith.truncf %29 : vector<100x128xf32> to vector<100x128xbf16>
    %cst_21 = arith.constant dense<0.000000e+00> : vector<50x128xf32>
    %33 = tpu.matmul %30, %32, %cst_21 {dimension_numbers = #tpu.dot_dimension_numbers<[1], [0], [0], [1], [0, 0, 1, 1], [], []>} : vector<50x100xbf16>, vector<100x128xbf16>, vector<50x128xf32> -> vector<50x128xf32>
    %34 = vector.broadcast %31 : vector<50x1xf32> to vector<50x128xf32>
    %35 = arith.addf %33, %34 : vector<50x128xf32>
    %cst_22 = arith.constant 0.000000e+00 : f32
    %36 = vector.broadcast %cst_22 : f32 to vector<50x128xf32>
    %37 = arith.maximumf %35, %36 : vector<50x128xf32>
    %c0_23 = arith.constant 0 : index
    %c0_24 = arith.constant 0 : index
    %38 = vector.load %arg10[%c0_23, %c0_24] : memref<1x50xbf16, #tpu.memory_space<vmem>>, vector<1x50xbf16>
    %c0_25 = arith.constant 0 : index
    %c0_26 = arith.constant 0 : index
    %39 = vector.load %arg11[%c0_25, %c0_26] : memref<1x1xf32, #tpu.memory_space<vmem>>, vector<1x1xf32>
    %40 = arith.truncf %37 : vector<50x128xf32> to vector<50x128xbf16>
    %cst_27 = arith.constant dense<0.000000e+00> : vector<1x128xf32>
    %41 = tpu.matmul %38, %40, %cst_27 {dimension_numbers = #tpu.dot_dimension_numbers<[1], [0], [0], [1], [0, 0, 1, 1], [], []>} : vector<1x50xbf16>, vector<50x128xbf16>, vector<1x128xf32> -> vector<1x128xf32>
    %42 = vector.broadcast %39 : vector<1x1xf32> to vector<1x128xf32>
    %43 = arith.addf %41, %42 : vector<1x128xf32>
    %cst_28 = arith.constant 0.000000e+00 : f32
    %44 = vector.broadcast %cst_28 : f32 to vector<1x128xf32>
    %45 = arith.maximumf %43, %44 : vector<1x128xf32>
    %c0_29 = arith.constant 0 : index
    %c0_30 = arith.constant 0 : index
    %46 = vector.load %arg12[%c0_29, %c0_30] : memref<1x128xf32, #tpu.memory_space<vmem>>, vector<1x128xf32>
    tpu.vector_store %arg12[%c0_29, %c0_30], %45 {strides = array<i32>} : memref<1x128xf32, #tpu.memory_space<vmem>>, vector<1x128xf32>,
    return
  }
  func.func @transform_0(%arg0: i32) -> (i32, i32) {
    %c0_i32 = arith.constant 0 : i32
    %c0_i32_0 = arith.constant 0 : i32
    return %c0_i32, %arg0 : i32, i32
  }
  func.func @transform_1(%arg0: i32) -> (i32, i32) {
    %c0_i32 = arith.constant 0 : i32
    %c0_i32_0 = arith.constant 0 : i32
    return %c0_i32, %arg0 : i32, i32
  }
  func.func @transform_2(%arg0: i32) -> (i32, i32) {
    %c0_i32 = arith.constant 0 : i32
    %c0_i32_0 = arith.constant 0 : i32
    %c0_i32_1 = arith.constant 0 : i32
    return %c0_i32, %c0_i32_0 : i32, i32
  }
  func.func @transform_3(%arg0: i32) -> (i32, i32) {
    %c0_i32 = arith.constant 0 : i32
    %c0_i32_0 = arith.constant 0 : i32
    %c0_i32_1 = arith.constant 0 : i32
    return %c0_i32, %c0_i32_0 : i32, i32
  }
  func.func @transform_4(%arg0: i32) -> (i32, i32) {
    %c0_i32 = arith.constant 0 : i32
    %c0_i32_0 = arith.constant 0 : i32
    %c0_i32_1 = arith.constant 0 : i32
    return %c0_i32, %c0_i32_0 : i32, i32
  }
  func.func @transform_5(%arg0: i32) -> (i32, i32) {
    %c0_i32 = arith.constant 0 : i32
    %c0_i32_0 = arith.constant 0 : i32
    %c0_i32_1 = arith.constant 0 : i32
    return %c0_i32, %c0_i32_0 : i32, i32
  }
  func.func @transform_6(%arg0: i32) -> (i32, i32) {
    %c0_i32 = arith.constant 0 : i32
    %c0_i32_0 = arith.constant 0 : i32
    %c0_i32_1 = arith.constant 0 : i32
    return %c0_i32, %c0_i32_0 : i32, i32
  }
  func.func @transform_7(%arg0: i32) -> (i32, i32) {
    %c0_i32 = arith.constant 0 : i32
    %c0_i32_0 = arith.constant 0 : i32
    %c0_i32_1 = arith.constant 0 : i32
    return %c0_i32, %c0_i32_0 : i32, i32
  }
  func.func @transform_8(%arg0: i32) -> (i32, i32) {
    %c0_i32 = arith.constant 0 : i32
    %c0_i32_0 = arith.constant 0 : i32
    %c0_i32_1 = arith.constant 0 : i32
    return %c0_i32, %c0_i32_0 : i32, i32
  }
  func.func @transform_9(%arg0: i32) -> (i32, i32) {
    %c0_i32 = arith.constant 0 : i32
    %c0_i32_0 = arith.constant 0 : i32
    %c0_i32_1 = arith.constant 0 : i32
    return %c0_i32, %c0_i32_0 : i32, i32
  }
  func.func @transform_10(%arg0: i32) -> (i32, i32) {
    %c0_i32 = arith.constant 0 : i32
    %c0_i32_0 = arith.constant 0 : i32
    %c0_i32_1 = arith.constant 0 : i32
    return %c0_i32, %c0_i32_0 : i32, i32
  }
  func.func @transform_11(%arg0: i32) -> (i32, i32) {
    %c0_i32 = arith.constant 0 : i32
    %c0_i32_0 = arith.constant 0 : i32
    return %c0_i32, %arg0 : i32, i32
  }
}

</mosaic_0001>

<llo_original>
// kernel: explicit_dlcrs_forward.1
$region0: #{explicit_dlcrs_forward.1}
  #allocation0 [shape = 'u32[]', space=smem, size = 0x4, offset = 0x4, fixed_abs, tag = 'smem constant byte address 0x4 - core index']
  #allocation1 [shape = 'u32[144,128]{1,0:T(1,128)}', space=vmem, size = 0x12000, scoped, tag = 'internal scratch']
  #allocation2 [shape = 'f32[1,1]{1,0:T(1,128)S(1)}', space=vmem, size = 0x200, scoped, tag = 'scoped memory for explicit_dlcrs_forward.1']
  %s0 = inlined_call_operand.vmem [shape: s32[1,256], index: 0, kind: input, shape index: {}]
  %s1 = inlined_call_operand.vmem [shape: s32[1,256], index: 1, kind: input, shape index: {}]
  %s2 = inlined_call_operand.vmem [shape: bf16[16,100], index: 2, kind: input, shape index: {}]
  %s3 = inlined_call_operand.vmem [shape: bf16[16,120], index: 3, kind: input, shape index: {}]
  %s4 = inlined_call_operand.vmem [shape: bf16[100,16], index: 4, kind: input, shape index: {}]
  %s5 = inlined_call_operand.vmem [shape: bf16[100,16], index: 5, kind: input, shape index: {}]
  %s6 = inlined_call_operand.vmem [shape: f32[100,1], index: 6, kind: input, shape index: {}]
  %s7 = inlined_call_operand.vmem [shape: bf16[50,100], index: 7, kind: input, shape index: {}]
  %s8 = inlined_call_operand.vmem [shape: f32[50,1], index: 8, kind: input, shape index: {}]
  %s9 = inlined_call_operand.vmem [shape: bf16[1,50], index: 9, kind: input, shape index: {}]
  %s10 = inlined_call_operand.<no memory space> [shape: f32[1,1], index: 10, kind: input, shape index: {}]
  %s11 = inlined_call_operand.vmem [shape: f32[1,256], index: 11, kind: output, shape index: {}]
  %s12 = sld [smem:[#allocation0]]
  $region77: #{explicit_dlcrs_forward.1} parent=0
    _
  %s14 = ssub.s32 1, %s12
  %s15 = scalar_select 0, %s14, %s12
  %v16 = vstv %s10
  %17 = vst [vmem:[#allocation2] sm:$0x1] %v16
  loop: start=0, step=1, limit=4
  $region2: #{explicit_dlcrs_forward.1} parent=0 // loop_pre_header
    _
  $region3: #{explicit_dlcrs_forward.1} parent=0 // loop_header
    %s19 = sphi 0, %s23
    %p20 = scmp.ge.s32.totalorder %s19, 4
    %s29 = sphi 0, %s31
    %s32 = sphi 0, %s29
    %s33 = sphi 0, %s32
    %s49 = sphi 0, %s33
    %s55 = sphi 0, %s57
    %s58 = sphi 0, %s55
    %s59 = sphi 0, %s58
    %s75 = sphi 0, %s59
    %s79 = sphi 0, %s79
    %s81 = sphi 0, %s79
    %s82 = sphi 0, %s81
    %s96 = sphi 0, %s82
    %s100 = sphi 0, %s100
    %s102 = sphi 0, %s100
    %s103 = sphi 0, %s102
    %s117 = sphi 0, %s103
    %s121 = sphi 0, %s121
    %s123 = sphi 0, %s121
    %s124 = sphi 0, %s123
    %s138 = sphi 0, %s124
    %s142 = sphi 0, %s142
    %s144 = sphi 0, %s142
    %s145 = sphi 0, %s144
    %s159 = sphi 0, %s145
    %s163 = sphi 0, %s163
    %s165 = sphi 0, %s163
    %s166 = sphi 0, %s165
    %s180 = sphi 0, %s166
    %s184 = sphi 0, %s184
    %s186 = sphi 0, %s184
    %s187 = sphi 0, %s186
    %s201 = sphi 0, %s187
    %s205 = sphi 0, %s205
    %s207 = sphi 0, %s205
    %s208 = sphi 0, %s207
    %s222 = sphi 0, %s208
    %s226 = sphi 0, %s226
    %s228 = sphi 0, %s226
    %s229 = sphi 0, %s228
    %s243 = sphi 0, %s229
    %s247 = sphi 0, %s247
    %s249 = sphi 0, %s247
    %s250 = sphi 0, %s249
    %s264 = sphi 0, %s250
    %s270 = sphi 0, %s272
    %s273 = sphi 0, %s270
    %s274 = sphi 0, %s273
    %s290 = sphi 0, %s274
  $region4: #{explicit_dlcrs_forward.1} parent=0 // loop_header_branch
    %22 = sbr.rel (%p20) target = $region8
  $region5: #{explicit_dlcrs_forward.1} parent=0 // loop_body
    %s24 = ssub.s32 %s19, 1
    %s25 = ssub.s32 %s19, 2
    %s26 = sadd.s32 %s19, 1
    %s27 = ssub.s32 %s19, %s26
    %p28 = scmp.eq.s32.totalorder %s27, 0
    %s30 = sadd.s32 %s29, 1
    %s31 = scalar_select %p28, %s29, %s30
    %p34 = pneg %p28
    %p35 = scmp.eq.s32.totalorder %s19, 1
    %p36 = por %p34, %p35
    %p37 = scmp.ne.s32.totalorder %s29, %s32
    %p38 = scmp.eq.s32.totalorder %s19, 0
    %p39 = por %p37, %p38
    %p40 = scmp.ne.s32.totalorder %s29, %s32
    %p41 = scmp.eq.s32.totalorder %s24, 1
    %p42 = por %p40, %p41
    %p43 = scmp.ne.s32.totalorder %s32, %s33
    %p44 = scmp.eq.s32.totalorder %s24, 0
    %p45 = por %p43, %p44
    %p46 = scmp.ne.s32.totalorder %s32, %s33
    %p47 = scmp.eq.s32.totalorder %s25, 1
    %p48 = por %p46, %p47
    %p50 = scmp.ne.s32.totalorder %s33, %s49
    %p51 = scmp.eq.s32.totalorder %s25, 0
    %p52 = por %p50, %p51
    %s53 = ssub.s32 %s19, %s26
    %p54 = scmp.eq.s32.totalorder %s53, 0
    %s56 = sadd.s32 %s55, 1
    %s57 = scalar_select %p54, %s55, %s56
    %p60 = pneg %p54
    %p61 = scmp.eq.s32.totalorder %s19, 1
    %p62 = por %p60, %p61
    %p63 = scmp.ne.s32.totalorder %s55, %s58
    %p64 = scmp.eq.s32.totalorder %s19, 0
    %p65 = por %p63, %p64
    %p66 = scmp.ne.s32.totalorder %s55, %s58
    %p67 = scmp.eq.s32.totalorder %s24, 1
    %p68 = por %p66, %p67
    %p69 = scmp.ne.s32.totalorder %s58, %s59
    %p70 = scmp.eq.s32.totalorder %s24, 0
    %p71 = por %p69, %p70
    %p72 = scmp.ne.s32.totalorder %s58, %s59
    %p73 = scmp.eq.s32.totalorder %s25, 1
    %p74 = por %p72, %p73
    %p76 = scmp.ne.s32.totalorder %s59, %s75
    %p77 = scmp.eq.s32.totalorder %s25, 0
    %p78 = por %p76, %p77
    %s80 = sadd.s32 %s79, 1
    %p83 = scmp.eq.s32.totalorder %s19, 1
    %p84 = scmp.ne.s32.totalorder %s79, %s81
    %p85 = scmp.eq.s32.totalorder %s19, 0
    %p86 = por %p84, %p85
    %p87 = scmp.ne.s32.totalorder %s79, %s81
    %p88 = scmp.eq.s32.totalorder %s24, 1
    %p89 = por %p87, %p88
    %p90 = scmp.ne.s32.totalorder %s81, %s82
    %p91 = scmp.eq.s32.totalorder %s24, 0
    %p92 = por %p90, %p91
    %p93 = scmp.ne.s32.totalorder %s81, %s82
    %p94 = scmp.eq.s32.totalorder %s25, 1
    %p95 = por %p93, %p94
    %p97 = scmp.ne.s32.totalorder %s82, %s96
    %p98 = scmp.eq.s32.totalorder %s25, 0
    %p99 = por %p97, %p98
    %s101 = sadd.s32 %s100, 1
    %p104 = scmp.eq.s32.totalorder %s19, 1
    %p105 = scmp.ne.s32.totalorder %s100, %s102
    %p106 = scmp.eq.s32.totalorder %s19, 0
    %p107 = por %p105, %p106
    %p108 = scmp.ne.s32.totalorder %s100, %s102
    %p109 = scmp.eq.s32.totalorder %s24, 1
    %p110 = por %p108, %p109
    %p111 = scmp.ne.s32.totalorder %s102, %s103
    %p112 = scmp.eq.s32.totalorder %s24, 0
    %p113 = por %p111, %p112
    %p114 = scmp.ne.s32.totalorder %s102, %s103
    %p115 = scmp.eq.s32.totalorder %s25, 1
    %p116 = por %p114, %p115
    %p118 = scmp.ne.s32.totalorder %s103, %s117
    %p119 = scmp.eq.s32.totalorder %s25, 0
    %p120 = por %p118, %p119
    %s122 = sadd.s32 %s121, 1
    %p125 = scmp.eq.s32.totalorder %s19, 1
    %p126 = scmp.ne.s32.totalorder %s121, %s123
    %p127 = scmp.eq.s32.totalorder %s19, 0
    %p128 = por %p126, %p127
    %p129 = scmp.ne.s32.totalorder %s121, %s123
    %p130 = scmp.eq.s32.totalorder %s24, 1
    %p131 = por %p129, %p130
    %p132 = scmp.ne.s32.totalorder %s123, %s124
    %p133 = scmp.eq.s32.totalorder %s24, 0
    %p134 = por %p132, %p133
    %p135 = scmp.ne.s32.totalorder %s123, %s124
    %p136 = scmp.eq.s32.totalorder %s25, 1
    %p137 = por %p135, %p136
    %p139 = scmp.ne.s32.totalorder %s124, %s138
    %p140 = scmp.eq.s32.totalorder %s25, 0
    %p141 = por %p139, %p140
    %s143 = sadd.s32 %s142, 1
    %p146 = scmp.eq.s32.totalorder %s19, 1
    %p147 = scmp.ne.s32.totalorder %s142, %s144
    %p148 = scmp.eq.s32.totalorder %s19, 0
    %p149 = por %p147, %p148
    %p150 = scmp.ne.s32.totalorder %s142, %s144
    %p151 = scmp.eq.s32.totalorder %s24, 1
    %p152 = por %p150, %p151
    %p153 = scmp.ne.s32.totalorder %s144, %s145
    %p154 = scmp.eq.s32.totalorder %s24, 0
    %p155 = por %p153, %p154
    %p156 = scmp.ne.s32.totalorder %s144, %s145
    %p157 = scmp.eq.s32.totalorder %s25, 1
    %p158 = por %p156, %p157
    %p160 = scmp.ne.s32.totalorder %s145, %s159
    %p161 = scmp.eq.s32.totalorder %s25, 0
    %p162 = por %p160, %p161
    %s164 = sadd.s32 %s163, 1
    %p167 = scmp.eq.s32.totalorder %s19, 1
    %p168 = scmp.ne.s32.totalorder %s163, %s165
    %p169 = scmp.eq.s32.totalorder %s19, 0
    %p170 = por %p168, %p169
    %p171 = scmp.ne.s32.totalorder %s163, %s165
    %p172 = scmp.eq.s32.totalorder %s24, 1
    %p173 = por %p171, %p172
    %p174 = scmp.ne.s32.totalorder %s165, %s166
    %p175 = scmp.eq.s32.totalorder %s24, 0
    %p176 = por %p174, %p175
    %p177 = scmp.ne.s32.totalorder %s165, %s166
    %p178 = scmp.eq.s32.totalorder %s25, 1
    %p179 = por %p177, %p178
    %p181 = scmp.ne.s32.totalorder %s166, %s180
    %p182 = scmp.eq.s32.totalorder %s25, 0
    %p183 = por %p181, %p182
    %s185 = sadd.s32 %s184, 1
    %p188 = scmp.eq.s32.totalorder %s19, 1
    %p189 = scmp.ne.s32.totalorder %s184, %s186
    %p190 = scmp.eq.s32.totalorder %s19, 0
    %p191 = por %p189, %p190
    %p192 = scmp.ne.s32.totalorder %s184, %s186
    %p193 = scmp.eq.s32.totalorder %s24, 1
    %p194 = por %p192, %p193
    %p195 = scmp.ne.s32.totalorder %s186, %s187
    %p196 = scmp.eq.s32.totalorder %s24, 0
    %p197 = por %p195, %p196
    %p198 = scmp.ne.s32.totalorder %s186, %s187
    %p199 = scmp.eq.s32.totalorder %s25, 1
    %p200 = por %p198, %p199
    %p202 = scmp.ne.s32.totalorder %s187, %s201
    %p203 = scmp.eq.s32.totalorder %s25, 0
    %p204 = por %p202, %p203
    %s206 = sadd.s32 %s205, 1
    %p209 = scmp.eq.s32.totalorder %s19, 1
    %p210 = scmp.ne.s32.totalorder %s205, %s207
    %p211 = scmp.eq.s32.totalorder %s19, 0
    %p212 = por %p210, %p211
    %p213 = scmp.ne.s32.totalorder %s205, %s207
    %p214 = scmp.eq.s32.totalorder %s24, 1
    %p215 = por %p213, %p214
    %p216 = scmp.ne.s32.totalorder %s207, %s208
    %p217 = scmp.eq.s32.totalorder %s24, 0
    %p218 = por %p216, %p217
    %p219 = scmp.ne.s32.totalorder %s207, %s208
    %p220 = scmp.eq.s32.totalorder %s25, 1
    %p221 = por %p219, %p220
    %p223 = scmp.ne.s32.totalorder %s208, %s222
    %p224 = scmp.eq.s32.totalorder %s25, 0
    %p225 = por %p223, %p224
    %s227 = sadd.s32 %s226, 1
    %p230 = scmp.eq.s32.totalorder %s19, 1
    %p231 = scmp.ne.s32.totalorder %s226, %s228
    %p232 = scmp.eq.s32.totalorder %s19, 0
    %p233 = por %p231, %p232
    %p234 = scmp.ne.s32.totalorder %s226, %s228
    %p235 = scmp.eq.s32.totalorder %s24, 1
    %p236 = por %p234, %p235
    %p237 = scmp.ne.s32.totalorder %s228, %s229
    %p238 = scmp.eq.s32.totalorder %s24, 0
    %p239 = por %p237, %p238
    %p240 = scmp.ne.s32.totalorder %s228, %s229
    %p241 = scmp.eq.s32.totalorder %s25, 1
    %p242 = por %p240, %p241
    %p244 = scmp.ne.s32.totalorder %s229, %s243
    %p245 = scmp.eq.s32.totalorder %s25, 0
    %p246 = por %p244, %p245
    %s248 = sadd.s32 %s247, 1
    %p251 = scmp.eq.s32.totalorder %s19, 1
    %p252 = scmp.ne.s32.totalorder %s247, %s249
    %p253 = scmp.eq.s32.totalorder %s19, 0
    %p254 = por %p252, %p253
    %p255 = scmp.ne.s32.totalorder %s247, %s249
    %p256 = scmp.eq.s32.totalorder %s24, 1
    %p257 = por %p255, %p256
    %p258 = scmp.ne.s32.totalorder %s249, %s250
    %p259 = scmp.eq.s32.totalorder %s24, 0
    %p260 = por %p258, %p259
    %p261 = scmp.ne.s32.totalorder %s249, %s250
    %p262 = scmp.eq.s32.totalorder %s25, 1
    %p263 = por %p261, %p262
    %p265 = scmp.ne.s32.totalorder %s250, %s264
    %p266 = scmp.eq.s32.totalorder %s25, 0
    %p267 = por %p265, %p266
    %s268 = ssub.s32 %s19, %s26
    %p269 = scmp.eq.s32.totalorder %s268, 0
    %s271 = sadd.s32 %s270, 1
    %s272 = scalar_select %p269, %s270, %s271
    %p275 = pneg %p269
    %p276 = scmp.eq.s32.totalorder %s19, 1
    %p277 = por %p275, %p276
    %p278 = scmp.ne.s32.totalorder %s270, %s273
    %p279 = scmp.eq.s32.totalorder %s19, 0
    %p280 = por %p278, %p279
    %p281 = scmp.ne.s32.totalorder %s270, %s273
    %p282 = scmp.eq.s32.totalorder %s24, 1
    %p283 = por %p281, %p282
    %p284 = scmp.ne.s32.totalorder %s273, %s274
    %p285 = scmp.eq.s32.totalorder %s24, 0
    %p286 = por %p284, %p285
    %p287 = scmp.ne.s32.totalorder %s273, %s274
    %p288 = scmp.eq.s32.totalorder %s25, 1
    %p289 = por %p287, %p288
    %p291 = scmp.ne.s32.totalorder %s274, %s290
    %p292 = scmp.eq.s32.totalorder %s25, 0
    %p293 = por %p291, %p292
    %p294 = scmp.le.s32.totalorder 1, %s19
    %p295 = scmp.lt.s32.totalorder %s19, 3
    %p296 = pnand %p294, %p295
    %p297 = pneg %p296
    // Predicated region
    $region9: #{explicit_dlcrs_forward.1} parent=5 // pred_check
      _
    $region10: #{explicit_dlcrs_forward.1} parent=5 // pred_check_branch
      %299 = sbr.rel (%p296) target = $region12
    $region11: #{explicit_dlcrs_forward.1} parent=5 // pred_region
      %s300 = ssub.s32 %s19, 1
      // Predicated region
      $region13: #{explicit_dlcrs_forward.1} parent=11 // pred_check
        %p301 = pneg %p92
      $region14: #{explicit_dlcrs_forward.1} parent=11 // pred_check_branch
        %303 = sbr.rel (%p301) target = $region16
      $region15: #{explicit_dlcrs_forward.1} parent=11 // pred_region
        _
      $region16: #{explicit_dlcrs_forward.1} parent=11 // pred_fallthru
        _
      // Predicated region
      $region17: #{explicit_dlcrs_forward.1} parent=11 // pred_check
        %p304 = pneg %p113
      $region18: #{explicit_dlcrs_forward.1} parent=11 // pred_check_branch
        %306 = sbr.rel (%p304) target = $region20
      $region19: #{explicit_dlcrs_forward.1} parent=11 // pred_region
        _
      $region20: #{explicit_dlcrs_forward.1} parent=11 // pred_fallthru
        _
      // Predicated region
      $region21: #{explicit_dlcrs_forward.1} parent=11 // pred_check
        %p307 = pneg %p134
      $region22: #{explicit_dlcrs_forward.1} parent=11 // pred_check_branch
        %309 = sbr.rel (%p307) target = $region24
      $region23: #{explicit_dlcrs_forward.1} parent=11 // pred_region
        _
      $region24: #{explicit_dlcrs_forward.1} parent=11 // pred_fallthru
        _
      // Predicated region
      $region25: #{explicit_dlcrs_forward.1} parent=11 // pred_check
        %p310 = pneg %p155
      $region26: #{explicit_dlcrs_forward.1} parent=11 // pred_check_branch
        %312 = sbr.rel (%p310) target = $region28
      $region27: #{explicit_dlcrs_forward.1} parent=11 // pred_region
        _
      $region28: #{explicit_dlcrs_forward.1} parent=11 // pred_fallthru
        _
      // Predicated region
      $region29: #{explicit_dlcrs_forward.1} parent=11 // pred_check
        %p313 = pneg %p176
      $region30: #{explicit_dlcrs_forward.1} parent=11 // pred_check_branch
        %315 = sbr.rel (%p313) target = $region32
      $region31: #{explicit_dlcrs_forward.1} parent=11 // pred_region
        _
      $region32: #{explicit_dlcrs_forward.1} parent=11 // pred_fallthru
        _
      // Predicated region
      $region33: #{explicit_dlcrs_forward.1} parent=11 // pred_check
        %p316 = pneg %p197
      $region34: #{explicit_dlcrs_forward.1} parent=11 // pred_check_branch
        %318 = sbr.rel (%p316) target = $region36
      $region35: #{explicit_dlcrs_forward.1} parent=11 // pred_region
        _
      $region36: #{explicit_dlcrs_forward.1} parent=11 // pred_fallthru
        _
      // Predicated region
      $region37: #{explicit_dlcrs_forward.1} parent=11 // pred_check
        %p319 = pneg %p218
      $region38: #{explicit_dlcrs_forward.1} parent=11 // pred_check_branch
        %321 = sbr.rel (%p319) target = $region40
      $region39: #{explicit_dlcrs_forward.1} parent=11 // pred_region
        _
      $region40: #{explicit_dlcrs_forward.1} parent=11 // pred_fallthru
        _
      // Predicated region
      $region41: #{explicit_dlcrs_forward.1} parent=11 // pred_check
        %p322 = pneg %p239
      $region42: #{explicit_dlcrs_forward.1} parent=11 // pred_check_branch
        %324 = sbr.rel (%p322) target = $region44
      $region43: #{explicit_dlcrs_forward.1} parent=11 // pred_region
        _
      $region44: #{explicit_dlcrs_forward.1} parent=11 // pred_fallthru
        _
      // Predicated region
      $region45: #{explicit_dlcrs_forward.1} parent=11 // pred_check
        %p325 = pneg %p260
      $region46: #{explicit_dlcrs_forward.1} parent=11 // pred_check_branch
        %327 = sbr.rel (%p325) target = $region48
      $region47: #{explicit_dlcrs_forward.1} parent=11 // pred_region
        _
      $region48: #{explicit_dlcrs_forward.1} parent=11 // pred_fallthru
        _
    $region12: #{explicit_dlcrs_forward.1} parent=5 // pred_fallthru
      _
    %p328 = scmp.lt.s32.totalorder %s19, 2
    // Predicated region
    $region49: #{explicit_dlcrs_forward.1} parent=5 // pred_check
      %p329 = pneg %p328
    $region50: #{explicit_dlcrs_forward.1} parent=5 // pred_check_branch
      %331 = sbr.rel (%p329) target = $region52
    $region51: #{explicit_dlcrs_forward.1} parent=5 // pred_region
      // Predicated region
      $region53: #{explicit_dlcrs_forward.1} parent=51 // pred_check
        %p332 = pneg %p39
      $region54: #{explicit_dlcrs_forward.1} parent=51 // pred_check_branch
        %334 = sbr.rel (%p332) target = $region56
      $region55: #{explicit_dlcrs_forward.1} parent=51 // pred_region
        %p335 = scmp.lt.s32.totalorder %s19, 1
        %s336 = scalar_select %p335, %s19, 1
        %s337 = scalar_lea.vmem %s0, %s336
      $region56: #{explicit_dlcrs_forward.1} parent=51 // pred_fallthru
        _
      // Predicated region
      $region57: #{explicit_dlcrs_forward.1} parent=51 // pred_check
        %p338 = pneg %p65
      $region58: #{explicit_dlcrs_forward.1} parent=51 // pred_check_branch
        %340 = sbr.rel (%p338) target = $region60
      $region59: #{explicit_dlcrs_forward.1} parent=51 // pred_region
        %p341 = scmp.lt.s32.totalorder %s19, 1
        %s342 = scalar_select %p341, %s19, 1
        %s343 = scalar_lea.vmem %s1, %s342
      $region60: #{explicit_dlcrs_forward.1} parent=51 // pred_fallthru
        _
    $region52: #{explicit_dlcrs_forward.1} parent=5 // pred_fallthru
      _
    %p344 = scmp.le.s32.totalorder 1, %s19
    %p345 = scmp.lt.s32.totalorder %s19, 3
    %p346 = pnand %p344, %p345
    %p347 = pneg %p346
    // Predicated region
    $region61: #{explicit_dlcrs_forward.1} parent=5 // pred_check
      _
    $region62: #{explicit_dlcrs_forward.1} parent=5 // pred_check_branch
      %349 = sbr.rel (%p346) target = $region64
    $region63: #{explicit_dlcrs_forward.1} parent=5 // pred_region
      %s350 = ssub.s32 %s19, 1
      %p351 = scmp.lt.s32.totalorder %s24, 1
      %s352 = scalar_select %p351, %s24, 1
      %s353 = scalar_lea.vmem %s0, %s352
      %p354 = pneg %p45
      %p355 = pneg %p42
      %p356 = scmp.lt.s32.totalorder %s24, 1
      %s357 = scalar_select %p356, %s24, 1
      %s358 = scalar_lea.vmem %s1, %s357
      %p359 = pneg %p71
      %p360 = pneg %p68
      %p361 = pneg %p92
      %p362 = pneg %p89
      %p363 = pneg %p113
      %p364 = pneg %p110
      %p365 = pneg %p134
      %p366 = pneg %p131
      %p367 = pneg %p155
      %p368 = pneg %p152
      %p369 = pneg %p176
      %p370 = pneg %p173
      %p371 = pneg %p197
      %p372 = pneg %p194
      %p373 = pneg %p218
      %p374 = pneg %p215
      %p375 = pneg %p239
      %p376 = pneg %p236
      %p377 = pneg %p260
      %p378 = pneg %p257
      %p379 = pneg %p286
      %p380 = pneg %p283
      %p381 = scmp.lt.s32.totalorder %s24, 1
      %s382 = scalar_select %p381, %s24, 1
      %s383 = scalar_lea.vmem %s11, %s382
      %p384 = scmp.lt.s32.totalorder %s24, 1
      %s385 = scalar_select %p384, %s24, 1
      %s386 = scalar_lea.vmem %s0, %s385
      %p387 = scmp.lt.s32.totalorder %s24, 1
      %s388 = scalar_select %p387, %s24, 1
      %s389 = scalar_lea.vmem %s1, %s388
      %p390 = scmp.lt.s32.totalorder %s24, 1
      %s391 = scalar_select %p390, %s24, 1
      %s392 = scalar_lea.vmem %s11, %s391
      %v394 = vld [vmem:[%s386] sm:$0x1]
      %v395 = vlaneseq
      %v396 = vshrl.u32 %v395, 7
      %v397 = vadd.s32 %v396, 8
      %v398 = vadd.s32 %v396, 16
      %v399 = vadd.s32 %v396, 24
      %v400 = vadd.s32 %v396, 32
      %v401 = vadd.s32 %v396, 40
      %v402 = vadd.s32 %v396, 48
      %v403 = vadd.s32 %v396, 56
      %v404 = vadd.s32 %v396, 64
      %v405 = vadd.s32 %v396, 72
      %v406 = vadd.s32 %v396, 80
      %v407 = vadd.s32 %v396, 88
      %v408 = vadd.s32 %v396, 96
      %v409 = vlaneseq
      %v410 = vshrl.u32 %v409, 7
      %v411 = vsub.s32 0, %v410
      %v412 = vrot.slane %v394, %v411
      %vm413 = vcmp.eq.s32.totalorder %v412, %v396
      %vm414 = vcmp.eq.s32.totalorder %v412, %v397
      %vm415 = vcmp.eq.s32.totalorder %v412, %v398
      %vm416 = vcmp.eq.s32.totalorder %v412, %v399
      %vm417 = vcmp.eq.s32.totalorder %v412, %v400
      %vm418 = vcmp.eq.s32.totalorder %v412, %v401
      %vm419 = vcmp.eq.s32.totalorder %v412, %v402
      %vm420 = vcmp.eq.s32.totalorder %v412, %v403
      %vm421 = vcmp.eq.s32.totalorder %v412, %v404
      %vm422 = vcmp.eq.s32.totalorder %v412, %v405
      %vm423 = vcmp.eq.s32.totalorder %v412, %v406
      %vm424 = vcmp.eq.s32.totalorder %v412, %v407
      %vm425 = vcmp.eq.s32.totalorder %v412, %v408
      %v426 = vsel %vm413, 1, 0
      %v427 = vsel %vm414, 1, 0
      %v428 = vsel %vm415, 1, 0
      %v429 = vsel %vm416, 1, 0
      %v430 = vsel %vm417, 1, 0
      %v431 = vsel %vm418, 1, 0
      %v432 = vsel %vm419, 1, 0
      %v433 = vsel %vm420, 1, 0
      %v434 = vsel %vm421, 1, 0
      %v435 = vsel %vm422, 1, 0
      %v436 = vsel %vm423, 1, 0
      %v437 = vsel %vm424, 1, 0
      %v438 = vsel %vm425, 1, 0
      %v439 = vcvt.s32.f32 %v426
      %v440 = vcvt.s32.f32 %v427
      %v441 = vcvt.s32.f32 %v428
      %v442 = vcvt.s32.f32 %v429
      %v443 = vcvt.s32.f32 %v430
      %v444 = vcvt.s32.f32 %v431
      %v445 = vcvt.s32.f32 %v432
      %v446 = vcvt.s32.f32 %v433
      %v447 = vcvt.s32.f32 %v434
      %v448 = vcvt.s32.f32 %v435
      %v449 = vcvt.s32.f32 %v436
      %v450 = vcvt.s32.f32 %v437
      %v451 = vcvt.s32.f32 %v438
      %v452 = vpack.c.bf16 %v440, %v439
      %v453 = vpack.c.bf16 %v442, %v441
      %v454 = vpack.c.bf16 %v444, %v443
      %v455 = vpack.c.bf16 %v446, %v445
      %v456 = vpack.c.bf16 %v448, %v447
      %v457 = vpack.c.bf16 %v450, %v449
      %v458 = vpack.c.bf16 %v451, %v451
      %v459 = vld [vmem:[%s389] sm:$0x1]
      %v460 = vadd.s32 %v396, 104
      %v461 = vadd.s32 %v396, 112
      %v462 = vlaneseq
      %v463 = vshrl.u32 %v462, 7
      %v464 = vsub.s32 0, %v463
      %v465 = vrot.slane %v459, %v464
      %vm466 = vcmp.eq.s32.totalorder %v465, %v396
      %vm467 = vcmp.eq.s32.totalorder %v465, %v397
      %vm468 = vcmp.eq.s32.totalorder %v465, %v398
      %vm469 = vcmp.eq.s32.totalorder %v465, %v399
      %vm470 = vcmp.eq.s32.totalorder %v465, %v400
      %vm471 = vcmp.eq.s32.totalorder %v465, %v401
      %vm472 = vcmp.eq.s32.totalorder %v465, %v402
      %vm473 = vcmp.eq.s32.totalorder %v465, %v403
      %vm474 = vcmp.eq.s32.totalorder %v465, %v404
      %vm475 = vcmp.eq.s32.totalorder %v465, %v405
      %vm476 = vcmp.eq.s32.totalorder %v465, %v406
      %vm477 = vcmp.eq.s32.totalorder %v465, %v407
      %vm478 = vcmp.eq.s32.totalorder %v465, %v408
      %vm479 = vcmp.eq.s32.totalorder %v465, %v460
      %vm480 = vcmp.eq.s32.totalorder %v465, %v461
      %v481 = vsel %vm466, 1, 0
      %v482 = vsel %vm467, 1, 0
      %v483 = vsel %vm468, 1, 0
      %v484 = vsel %vm469, 1, 0
      %v485 = vsel %vm470, 1, 0
      %v486 = vsel %vm471, 1, 0
      %v487 = vsel %vm472, 1, 0
      %v488 = vsel %vm473, 1, 0
      %v489 = vsel %vm474, 1, 0
      %v490 = vsel %vm475, 1, 0
      %v491 = vsel %vm476, 1, 0
      %v492 = vsel %vm477, 1, 0
      %v493 = vsel %vm478, 1, 0
      %v494 = vsel %vm479, 1, 0
      %v495 = vsel %vm480, 1, 0
      %v496 = vcvt.s32.f32 %v481
      %v497 = vcvt.s32.f32 %v482
      %v498 = vcvt.s32.f32 %v483
      %v499 = vcvt.s32.f32 %v484
      %v500 = vcvt.s32.f32 %v485
      %v501 = vcvt.s32.f32 %v486
      %v502 = vcvt.s32.f32 %v487
      %v503 = vcvt.s32.f32 %v488
      %v504 = vcvt.s32.f32 %v489
      %v505 = vcvt.s32.f32 %v490
      %v506 = vcvt.s32.f32 %v491
      %v507 = vcvt.s32.f32 %v492
      %v508 = vcvt.s32.f32 %v493
      %v509 = vcvt.s32.f32 %v494
      %v510 = vcvt.s32.f32 %v495
      %v511 = vpack.c.bf16 %v497, %v496
      %v512 = vpack.c.bf16 %v499, %v498
      %v513 = vpack.c.bf16 %v501, %v500
      %v514 = vpack.c.bf16 %v503, %v502
      %v515 = vpack.c.bf16 %v505, %v504
      %v516 = vpack.c.bf16 %v507, %v506
      %v517 = vpack.c.bf16 %v509, %v508
      %v518 = vpack.c.bf16 %v510, %v510
      %v519 = vld [vmem:[%s2] sm:$0xf]
      %v520 = vld [vmem:[%s2 + $0x4] sm:$0xf]
      %v523 = vunpack.c.l.b16 %v519
      %v524 = vunpack.c.l.b16 %v520
      %v525 = vpack.c.b16 %v524, %v523
      %vm526 = vcmask 818176
      %v528 = vsel %vm526, %v525, 0
      %vm530 = vcmask 1041408
      %v532 = vsel %vm530, %v458, 0
      %534 = vmatprep.subr.bf16.mxu0 0
      %535 = vmatpush1.bf16.msra.mxu0 0
      %536 = vmatprep.subr.bf16.mxu0 0
      %537 = vmatpush1.bf16.msra.mxu0 %v532
      %538 = vmatprep.subr.bf16.mxu0 0
      %539 = vmatpush1.bf16.msra.mxu0 %v457
      %540 = vmatprep.subr.bf16.mxu0 0
      %541 = vmatpush1.bf16.msra.mxu0 %v456
      %542 = vmatprep.subr.bf16.mxu0 0
      %543 = vmatpush1.bf16.msra.mxu0 %v455
      %544 = vmatprep.subr.bf16.mxu0 0
      %545 = vmatpush1.bf16.msra.mxu0 %v454
      %546 = vmatprep.subr.bf16.mxu0 0
      %547 = vmatpush1.bf16.msra.mxu0 %v453
      %548 = vmatprep.subr.bf16.mxu0 0
      %549 = vmatpush1.bf16.msra.mxu0 %v452
      %550 = vmatprep.subr.bf16.mxu0 0
      %551 = vmatpush2.bf16.msra.mxu0 0
      %552 = vmatprep.subr.bf16.mxu0 0
      %553 = vmatpush2.bf16.msra.mxu0 0
      %554 = vmatprep.subr.bf16.mxu0 0
      %555 = vmatpush2.bf16.msra.mxu0 0
      %556 = vmatprep.subr.bf16.mxu0 0
      %557 = vmatpush2.bf16.msra.mxu0 0
      %558 = vmatprep.subr.bf16.mxu0 0
      %559 = vmatpush2.bf16.msra.mxu0 0
      %560 = vmatprep.subr.bf16.mxu0 0
      %561 = vmatpush2.bf16.msra.mxu0 0
      %562 = vmatprep.subr.bf16.mxu0 0
      %563 = vmatpush2.bf16.msra.mxu0 0
      %564 = vmatprep.subr.bf16.mxu0 0
      %565 = vmatpush2.bf16.msra.mxu0 0
      %566 = vmatprep.mubr.bf16.mxu0 0
      %567 = vmatmul.mubr.bf16.gmra.mxu0 %v528
      %v568 = vpop.f32.mrf.mxu0
      %v569 = vadd.f32 0.0, %v568
      %v570 = vpop.f32.mrf.mxu0
      %v571 = vpop.f32.mrf.mxu0
      %v572 = vadd.f32 0.0, %v571
      %v573 = vpop.f32.mrf.mxu0
      %574 = vdwg.mxu0
      %v575 = vld [vmem:[%s3] sm:$0xf]
      %v576 = vld [vmem:[%s3 + $0x4] sm:$0xf]
      %v579 = vunpack.c.l.b16 %v575
      %v580 = vunpack.c.l.b16 %v576
      %v581 = vpack.c.b16 %v580, %v579
      %vm582 = vcmask 982016
      %v584 = vsel %vm582, %v581, 0
      %vm586 = vcmask 1043456
      %v588 = vsel %vm586, %v518, 0
      %590 = vmatprep.subr.bf16.mxu0 0
      %591 = vmatpush1.bf16.msra.mxu0 %v588
      %592 = vmatprep.subr.bf16.mxu0 0
      %593 = vmatpush1.bf16.msra.mxu0 %v517
      %594 = vmatprep.subr.bf16.mxu0 0
      %595 = vmatpush1.bf16.msra.mxu0 %v516
      %596 = vmatprep.subr.bf16.mxu0 0
      %597 = vmatpush1.bf16.msra.mxu0 %v515
      %598 = vmatprep.subr.bf16.mxu0 0
      %599 = vmatpush1.bf16.msra.mxu0 %v514
      %600 = vmatprep.subr.bf16.mxu0 0
      %601 = vmatpush1.bf16.msra.mxu0 %v513
      %602 = vmatprep.subr.bf16.mxu0 0
      %603 = vmatpush1.bf16.msra.mxu0 %v512
      %604 = vmatprep.subr.bf16.mxu0 0
      %605 = vmatpush1.bf16.msra.mxu0 %v511
      %606 = vmatprep.subr.bf16.mxu0 0
      %607 = vmatpush2.bf16.msra.mxu0 0
      %608 = vmatprep.subr.bf16.mxu0 0
      %609 = vmatpush2.bf16.msra.mxu0 0
      %610 = vmatprep.subr.bf16.mxu0 0
      %611 = vmatpush2.bf16.msra.mxu0 0
      %612 = vmatprep.subr.bf16.mxu0 0
      %613 = vmatpush2.bf16.msra.mxu0 0
      %614 = vmatprep.subr.bf16.mxu0 0
      %615 = vmatpush2.bf16.msra.mxu0 0
      %616 = vmatprep.subr.bf16.mxu0 0
      %617 = vmatpush2.bf16.msra.mxu0 0
      %618 = vmatprep.subr.bf16.mxu0 0
      %619 = vmatpush2.bf16.msra.mxu0 0
      %620 = vmatprep.subr.bf16.mxu0 0
      %621 = vmatpush2.bf16.msra.mxu0 0
      %622 = vmatprep.mubr.bf16.mxu0 0
      %623 = vmatmul.mubr.bf16.gmra.mxu0 %v584
      %v624 = vpop.f32.mrf.mxu0
      %v625 = vadd.f32 0.0, %v624
      %v626 = vpop.f32.mrf.mxu0
      %v627 = vpop.f32.mrf.mxu0
      %v628 = vadd.f32 0.0, %v627
      %v629 = vpop.f32.mrf.mxu0
      %630 = vdwg.mxu0
      %v631 = vld [vmem:[%s4] sm:$0xf]
      %v632 = vld [vmem:[%s4 + $0x4] sm:$0xf]
      %v633 = vld [vmem:[%s4 + $0x8] sm:$0xf]
      %v634 = vld [vmem:[%s4 + $0xc] sm:$0xf]
      %v635 = vld [vmem:[%s4 + $0x10] sm:$0xf]
      %v636 = vld [vmem:[%s4 + $0x14] sm:$0xf]
      %v637 = vld [vmem:[%s4 + $0x18] sm:$0xf]
      %v638 = vld [vmem:[%s4 + $0x1c] sm:$0xf]
      %v639 = vld [vmem:[%s4 + $0x20] sm:$0xf]
      %v640 = vld [vmem:[%s4 + $0x24] sm:$0xf]
      %v641 = vld [vmem:[%s4 + $0x28] sm:$0xf]
      %v642 = vld [vmem:[%s4 + $0x2c] sm:$0xf]
      %v643 = vld [vmem:[%s4 + $0x30] sm:$0x3]
      %v644 = vpack.c.bf16 %v572, %v569
      %v645 = vld [vmem:[%s5] sm:$0xf]
      %v646 = vld [vmem:[%s5 + $0x4] sm:$0xf]
      %v647 = vld [vmem:[%s5 + $0x8] sm:$0xf]
      %v648 = vld [vmem:[%s5 + $0xc] sm:$0xf]
      %v649 = vld [vmem:[%s5 + $0x10] sm:$0xf]
      %v650 = vld [vmem:[%s5 + $0x14] sm:$0xf]
      %v651 = vld [vmem:[%s5 + $0x18] sm:$0xf]
      %v652 = vld [vmem:[%s5 + $0x1c] sm:$0xf]
      %v653 = vld [vmem:[%s5 + $0x20] sm:$0xf]
      %v654 = vld [vmem:[%s5 + $0x24] sm:$0xf]
      %v655 = vld [vmem:[%s5 + $0x28] sm:$0xf]
      %v656 = vld [vmem:[%s5 + $0x2c] sm:$0xf]
      %v657 = vld [vmem:[%s5 + $0x30] sm:$0x3]
      %v658 = vpack.c.bf16 %v628, %v625
      %v672 = vunpack.c.l.b16 %v645
      %v673 = vunpack.c.l.b16 %v646
      %v674 = vunpack.c.l.b16 %v647
      %v675 = vunpack.c.l.b16 %v648
      %v676 = vunpack.c.l.b16 %v649
      %v677 = vunpack.c.l.b16 %v650
      %v678 = vunpack.c.l.b16 %v651
      %v679 = vunpack.c.l.b16 %v652
      %v680 = vunpack.c.l.b16 %v653
      %v681 = vunpack.c.l.b16 %v654
      %v682 = vunpack.c.l.b16 %v655
      %v683 = vunpack.c.l.b16 %v656
      %v684 = vunpack.c.l.b16 %v657
      %v685 = vpack.c.b16 %v673, %v672
      %v686 = vpack.c.b16 %v675, %v674
      %v687 = vpack.c.b16 %v677, %v676
      %v688 = vpack.c.b16 %v679, %v678
      %v689 = vpack.c.b16 %v681, %v680
      %v690 = vpack.c.b16 %v683, %v682
      %v691 = vpack.c.b16 %v684, %v684
      %vm692 = vcmask 130048
      %v694 = vsel %vm692, %v685, 0
      %v697 = vsel %vm692, %v686, 0
      %v700 = vsel %vm692, %v687, 0
      %v703 = vsel %vm692, %v688, 0
      %v706 = vsel %vm692, %v689, 0
      %v709 = vsel %vm692, %v690, 0
      %v712 = vsel %vm692, %v691, 0
      %714 = vmatprep.subr.bf16.mxu0 0
      %715 = vmatpush1.bf16.msra.mxu0 0
      %716 = vmatprep.subr.bf16.mxu0 0
      %717 = vmatpush1.bf16.msra.mxu0 0
      %718 = vmatprep.subr.bf16.mxu0 0
      %719 = vmatpush1.bf16.msra.mxu0 0
      %720 = vmatprep.subr.bf16.mxu0 0
      %721 = vmatpush1.bf16.msra.mxu0 0
      %722 = vmatprep.subr.bf16.mxu0 0
      %723 = vmatpush1.bf16.msra.mxu0 0
      %724 = vmatprep.subr.bf16.mxu0 0
      %725 = vmatpush1.bf16.msra.mxu0 0
      %726 = vmatprep.subr.bf16.mxu0 0
      %727 = vmatpush1.bf16.msra.mxu0 0
      %728 = vmatprep.subr.bf16.mxu0 0
      %729 = vmatpush1.bf16.msra.mxu0 %v658
      %730 = vmatprep.subr.bf16.mxu0 0
      %731 = vmatpush2.bf16.msra.mxu0 0
      %732 = vmatprep.subr.bf16.mxu0 0
      %733 = vmatpush2.bf16.msra.mxu0 0
      %734 = vmatprep.subr.bf16.mxu0 0
      %735 = vmatpush2.bf16.msra.mxu0 0
      %736 = vmatprep.subr.bf16.mxu0 0
      %737 = vmatpush2.bf16.msra.mxu0 0
      %738 = vmatprep.subr.bf16.mxu0 0
      %739 = vmatpush2.bf16.msra.mxu0 0
      %740 = vmatprep.subr.bf16.mxu0 0
      %741 = vmatpush2.bf16.msra.mxu0 0
      %742 = vmatprep.subr.bf16.mxu0 0
      %743 = vmatpush2.bf16.msra.mxu0 0
      %744 = vmatprep.subr.bf16.mxu0 0
      %745 = vmatpush2.bf16.msra.mxu0 0
      %746 = vmatprep.mubr.bf16.mxu0 0
      %747 = vmatmul.mubr.bf16.gmra.mxu0 %v694
      %v748 = vpop.f32.mrf.mxu0
      %v749 = vadd.f32 0.0, %v748
      %v750 = vpop.f32.mrf.mxu0
      %v751 = vpop.f32.mrf.mxu0
      %v752 = vadd.f32 0.0, %v751
      %v753 = vpop.f32.mrf.mxu0
      %754 = vmatprep.mubr.bf16.mxu0 0
      %755 = vmatmul.mubr.bf16.gmra.mxu0 %v697
      %v756 = vpop.f32.mrf.mxu0
      %v757 = vadd.f32 0.0, %v756
      %v758 = vpop.f32.mrf.mxu0
      %v759 = vpop.f32.mrf.mxu0
      %v760 = vadd.f32 0.0, %v759
      %v761 = vpop.f32.mrf.mxu0
      %762 = vmatprep.mubr.bf16.mxu0 0
      %763 = vmatmul.mubr.bf16.gmra.mxu0 %v700
      %v764 = vpop.f32.mrf.mxu0
      %v765 = vadd.f32 0.0, %v764
      %v766 = vpop.f32.mrf.mxu0
      %v767 = vpop.f32.mrf.mxu0
      %v768 = vadd.f32 0.0, %v767
      %v769 = vpop.f32.mrf.mxu0
      %770 = vmatprep.mubr.bf16.mxu0 0
      %771 = vmatmul.mubr.bf16.gmra.mxu0 %v703
      %v772 = vpop.f32.mrf.mxu0
      %v773 = vadd.f32 0.0, %v772
      %v774 = vpop.f32.mrf.mxu0
      %v775 = vpop.f32.mrf.mxu0
      %v776 = vadd.f32 0.0, %v775
      %v777 = vpop.f32.mrf.mxu0
      %778 = vmatprep.mubr.bf16.mxu0 0
      %779 = vmatmul.mubr.bf16.gmra.mxu0 %v706
      %v780 = vpop.f32.mrf.mxu0
      %v781 = vadd.f32 0.0, %v780
      %v782 = vpop.f32.mrf.mxu0
      %v783 = vpop.f32.mrf.mxu0
      %v784 = vadd.f32 0.0, %v783
      %v785 = vpop.f32.mrf.mxu0
      %786 = vmatprep.mubr.bf16.mxu0 0
      %787 = vmatmul.mubr.bf16.gmra.mxu0 %v709
      %v788 = vpop.f32.mrf.mxu0
      %v789 = vadd.f32 0.0, %v788
      %v790 = vpop.f32.mrf.mxu0
      %v791 = vpop.f32.mrf.mxu0
      %v792 = vadd.f32 0.0, %v791
      %v793 = vpop.f32.mrf.mxu0
      %794 = vmatprep.mubr.bf16.mxu0 0
      %795 = vmatmul.mubr.bf16.gmra.mxu0 %v712
      %v796 = vpop.f32.mrf.mxu0
      %v797 = vadd.f32 0.0, %v796
      %v798 = vpop.f32.mrf.mxu0
      %v799 = vpop.f32.mrf.mxu0
      %v800 = vpop.f32.mrf.mxu0
      %801 = vdwg.mxu0
      %v815 = vunpack.c.l.b16 %v631
      %v816 = vunpack.c.l.b16 %v632
      %v817 = vunpack.c.l.b16 %v633
      %v818 = vunpack.c.l.b16 %v634
      %v819 = vunpack.c.l.b16 %v635
      %v820 = vunpack.c.l.b16 %v636
      %v821 = vunpack.c.l.b16 %v637
      %v822 = vunpack.c.l.b16 %v638
      %v823 = vunpack.c.l.b16 %v639
      %v824 = vunpack.c.l.b16 %v640
      %v825 = vunpack.c.l.b16 %v641
      %v826 = vunpack.c.l.b16 %v642
      %v827 = vunpack.c.l.b16 %v643
      %v828 = vpack.c.b16 %v816, %v815
      %v829 = vpack.c.b16 %v818, %v817
      %v830 = vpack.c.b16 %v820, %v819
      %v831 = vpack.c.b16 %v822, %v821
      %v832 = vpack.c.b16 %v824, %v823
      %v833 = vpack.c.b16 %v826, %v825
      %v834 = vpack.c.b16 %v827, %v827
      %v836 = vsel %vm692, %v828, 0
      %v839 = vsel %vm692, %v829, 0
      %v842 = vsel %vm692, %v830, 0
      %v845 = vsel %vm692, %v831, 0
      %v848 = vsel %vm692, %v832, 0
      %v851 = vsel %vm692, %v833, 0
      %v854 = vsel %vm692, %v834, 0
      %856 = vmatprep.subr.bf16.mxu0 0
      %857 = vmatpush1.bf16.msra.mxu0 0
      %858 = vmatprep.subr.bf16.mxu0 0
      %859 = vmatpush1.bf16.msra.mxu0 0
      %860 = vmatprep.subr.bf16.mxu0 0
      %861 = vmatpush1.bf16.msra.mxu0 0
      %862 = vmatprep.subr.bf16.mxu0 0
      %863 = vmatpush1.bf16.msra.mxu0 0
      %864 = vmatprep.subr.bf16.mxu0 0
      %865 = vmatpush1.bf16.msra.mxu0 0
      %866 = vmatprep.subr.bf16.mxu0 0
      %867 = vmatpush1.bf16.msra.mxu0 0
      %868 = vmatprep.subr.bf16.mxu0 0
      %869 = vmatpush1.bf16.msra.mxu0 0
      %870 = vmatprep.subr.bf16.mxu0 0
      %871 = vmatpush1.bf16.msra.mxu0 %v644
      %872 = vmatprep.subr.bf16.mxu0 0
      %873 = vmatpush2.bf16.msra.mxu0 0
      %874 = vmatprep.subr.bf16.mxu0 0
      %875 = vmatpush2.bf16.msra.mxu0 0
      %876 = vmatprep.subr.bf16.mxu0 0
      %877 = vmatpush2.bf16.msra.mxu0 0
      %878 = vmatprep.subr.bf16.mxu0 0
      %879 = vmatpush2.bf16.msra.mxu0 0
      %880 = vmatprep.subr.bf16.mxu0 0
      %881 = vmatpush2.bf16.msra.mxu0 0
      %882 = vmatprep.subr.bf16.mxu0 0
      %883 = vmatpush2.bf16.msra.mxu0 0
      %884 = vmatprep.subr.bf16.mxu0 0
      %885 = vmatpush2.bf16.msra.mxu0 0
      %886 = vmatprep.subr.bf16.mxu0 0
      %887 = vmatpush2.bf16.msra.mxu0 0
      %888 = vmatprep.mubr.bf16.mxu0 0
      %889 = vmatmul.mubr.bf16.gmra.mxu0 %v836
      %v890 = vpop.f32.mrf.mxu0
      %v891 = vadd.f32 %v749, %v890
      %v892 = vpop.f32.mrf.mxu0
      %v893 = vpop.f32.mrf.mxu0
      %v894 = vadd.f32 %v752, %v893
      %v895 = vpop.f32.mrf.mxu0
      %896 = vmatprep.mubr.bf16.mxu0 0
      %897 = vmatmul.mubr.bf16.gmra.mxu0 %v839
      %v898 = vpop.f32.mrf.mxu0
      %v899 = vadd.f32 %v757, %v898
      %v900 = vpop.f32.mrf.mxu0
      %v901 = vpop.f32.mrf.mxu0
      %v902 = vadd.f32 %v760, %v901
      %v903 = vpop.f32.mrf.mxu0
      %904 = vmatprep.mubr.bf16.mxu0 0
      %905 = vmatmul.mubr.bf16.gmra.mxu0 %v842
      %v906 = vpop.f32.mrf.mxu0
      %v907 = vadd.f32 %v765, %v906
      %v908 = vpop.f32.mrf.mxu0
      %v909 = vpop.f32.mrf.mxu0
      %v910 = vadd.f32 %v768, %v909
      %v911 = vpop.f32.mrf.mxu0
      %912 = vmatprep.mubr.bf16.mxu0 0
      %913 = vmatmul.mubr.bf16.gmra.mxu0 %v845
      %v914 = vpop.f32.mrf.mxu0
      %v915 = vadd.f32 %v773, %v914
      %v916 = vpop.f32.mrf.mxu0
      %v917 = vpop.f32.mrf.mxu0
      %v918 = vadd.f32 %v776, %v917
      %v919 = vpop.f32.mrf.mxu0
      %920 = vmatprep.mubr.bf16.mxu0 0
      %921 = vmatmul.mubr.bf16.gmra.mxu0 %v848
      %v922 = vpop.f32.mrf.mxu0
      %v923 = vadd.f32 %v781, %v922
      %v924 = vpop.f32.mrf.mxu0
      %v925 = vpop.f32.mrf.mxu0
      %v926 = vadd.f32 %v784, %v925
      %v927 = vpop.f32.mrf.mxu0
      %928 = vmatprep.mubr.bf16.mxu0 0
      %929 = vmatmul.mubr.bf16.gmra.mxu0 %v851
      %v930 = vpop.f32.mrf.mxu0
      %v931 = vadd.f32 %v789, %v930
      %v932 = vpop.f32.mrf.mxu0
      %v933 = vpop.f32.mrf.mxu0
      %v934 = vadd.f32 %v792, %v933
      %v935 = vpop.f32.mrf.mxu0
      %936 = vmatprep.mubr.bf16.mxu0 0
      %937 = vmatmul.mubr.bf16.gmra.mxu0 %v854
      %v938 = vpop.f32.mrf.mxu0
      %v939 = vadd.f32 %v797, %v938
      %v940 = vpop.f32.mrf.mxu0
      %v941 = vpop.f32.mrf.mxu0
      %v942 = vpop.f32.mrf.mxu0
      %943 = vdwg.mxu0
      %v944 = vld [vmem:[%s6] sm:$0xff]
      %v945 = vld [vmem:[%s6 + $0x8] sm:$0xff]
      %v946 = vld [vmem:[%s6 + $0x10] sm:$0xff]
      %v947 = vld [vmem:[%s6 + $0x18] sm:$0xff]
      %v948 = vld [vmem:[%s6 + $0x20] sm:$0xff]
      %v949 = vld [vmem:[%s6 + $0x28] sm:$0xff]
      %v950 = vld [vmem:[%s6 + $0x30] sm:$0xff]
      %v951 = vld [vmem:[%s6 + $0x38] sm:$0xff]
      %v952 = vld [vmem:[%s6 + $0x40] sm:$0xff]
      %v953 = vld [vmem:[%s6 + $0x48] sm:$0xff]
      %v954 = vld [vmem:[%s6 + $0x50] sm:$0xff]
      %v955 = vld [vmem:[%s6 + $0x58] sm:$0xff]
      %v956 = vld [vmem:[%s6 + $0x60] sm:$0xf]
      %958 = vset.pattern.permute.xlu0 0
      %959 = vperm.xlu0 %958, %v944
      %v960 = vpop.permute.xlu0 %959
      %963 = vset.pattern.permute.xlu0 0
      %964 = vperm.xlu0 %963, %v945
      %v965 = vpop.permute.xlu0 %964
      %968 = vset.pattern.permute.xlu0 0
      %969 = vperm.xlu0 %968, %v946
      %v970 = vpop.permute.xlu0 %969
      %973 = vset.pattern.permute.xlu0 0
      %974 = vperm.xlu0 %973, %v947
      %v975 = vpop.permute.xlu0 %974
      %978 = vset.pattern.permute.xlu0 0
      %979 = vperm.xlu0 %978, %v948
      %v980 = vpop.permute.xlu0 %979
      %983 = vset.pattern.permute.xlu0 0
      %984 = vperm.xlu0 %983, %v949
      %v985 = vpop.permute.xlu0 %984
      %988 = vset.pattern.permute.xlu0 0
      %989 = vperm.xlu0 %988, %v950
      %v990 = vpop.permute.xlu0 %989
      %993 = vset.pattern.permute.xlu0 0
      %994 = vperm.xlu0 %993, %v951
      %v995 = vpop.permute.xlu0 %994
      %998 = vset.pattern.permute.xlu0 0
      %999 = vperm.xlu0 %998, %v952
      %v1000 = vpop.permute.xlu0 %999
      %1003 = vset.pattern.permute.xlu0 0
      %1004 = vperm.xlu0 %1003, %v953
      %v1005 = vpop.permute.xlu0 %1004
      %1008 = vset.pattern.permute.xlu0 0
      %1009 = vperm.xlu0 %1008, %v954
      %v1010 = vpop.permute.xlu0 %1009
      %1013 = vset.pattern.permute.xlu0 0
      %1014 = vperm.xlu0 %1013, %v955
      %v1015 = vpop.permute.xlu0 %1014
      %1018 = vset.pattern.permute.xlu0 0
      %1019 = vperm.xlu0 %1018, %v956
      %v1020 = vpop.permute.xlu0 %1019
      %v1022 = vadd.f32 %v891, %v960
      %v1023 = vadd.f32 %v894, %v965
      %v1024 = vadd.f32 %v899, %v970
      %v1025 = vadd.f32 %v902, %v975
      %v1026 = vadd.f32 %v907, %v980
      %v1027 = vadd.f32 %v910, %v985
      %v1028 = vadd.f32 %v915, %v990
      %v1029 = vadd.f32 %v918, %v995
      %v1030 = vadd.f32 %v923, %v1000
      %v1031 = vadd.f32 %v926, %v1005
      %v1032 = vadd.f32 %v931, %v1010
      %v1033 = vadd.f32 %v934, %v1015
      %v1034 = vadd.f32 %v939, %v1020
      %v1035 = vmax.f32 %v1022, 0.0
      %v1036 = vmax.f32 %v1023, 0.0
      %v1037 = vmax.f32 %v1024, 0.0
      %v1038 = vmax.f32 %v1025, 0.0
      %v1039 = vmax.f32 %v1026, 0.0
      %v1040 = vmax.f32 %v1027, 0.0
      %v1041 = vmax.f32 %v1028, 0.0
      %v1042 = vmax.f32 %v1029, 0.0
      %v1043 = vmax.f32 %v1030, 0.0
      %v1044 = vmax.f32 %v1031, 0.0
      %v1045 = vmax.f32 %v1032, 0.0
      %v1046 = vmax.f32 %v1033, 0.0
      %v1047 = vmax.f32 %v1034, 0.0
      %v1048 = vld [vmem:[%s7] sm:$0xf]
      %v1049 = vld [vmem:[%s7 + $0x4] sm:$0xf]
      %v1050 = vld [vmem:[%s7 + $0x8] sm:$0xf]
      %v1051 = vld [vmem:[%s7 + $0xc] sm:$0xf]
      %v1052 = vld [vmem:[%s7 + $0x10] sm:$0xf]
      %v1053 = vld [vmem:[%s7 + $0x14] sm:$0xf]
      %v1054 = vld [vmem:[%s7 + $0x18] sm:$0x1]
      %v1055 = vld [vmem:[%s8] sm:$0xff]
      %v1056 = vld [vmem:[%s8 + $0x8] sm:$0xff]
      %v1057 = vld [vmem:[%s8 + $0x10] sm:$0xff]
      %v1058 = vld [vmem:[%s8 + $0x18] sm:$0xff]
      %v1059 = vld [vmem:[%s8 + $0x20] sm:$0xff]
      %v1060 = vld [vmem:[%s8 + $0x28] sm:$0xff]
      %v1061 = vld [vmem:[%s8 + $0x30] sm:$0x3]
      %v1062 = vpack.c.bf16 %v1036, %v1035
      %v1063 = vpack.c.bf16 %v1038, %v1037
      %v1064 = vpack.c.bf16 %v1040, %v1039
      %v1065 = vpack.c.bf16 %v1042, %v1041
      %v1066 = vpack.c.bf16 %v1044, %v1043
      %v1067 = vpack.c.bf16 %v1046, %v1045
      %v1068 = vpack.c.bf16 %v1047, %v1047
      %1070 = vset.pattern.permute.xlu0 0
      %1071 = vperm.xlu0 %1070, %v1055
      %v1072 = vpop.permute.xlu0 %1071
      %1075 = vset.pattern.permute.xlu0 0
      %1076 = vperm.xlu0 %1075, %v1056
      %v1077 = vpop.permute.xlu0 %1076
      %1080 = vset.pattern.permute.xlu0 0
      %1081 = vperm.xlu0 %1080, %v1057
      %v1082 = vpop.permute.xlu0 %1081
      %1085 = vset.pattern.permute.xlu0 0
      %1086 = vperm.xlu0 %1085, %v1058
      %v1087 = vpop.permute.xlu0 %1086
      %1090 = vset.pattern.permute.xlu0 0
      %1091 = vperm.xlu0 %1090, %v1059
      %v1092 = vpop.permute.xlu0 %1091
      %1095 = vset.pattern.permute.xlu0 0
      %1096 = vperm.xlu0 %1095, %v1060
      %v1097 = vpop.permute.xlu0 %1096
      %1100 = vset.pattern.permute.xlu0 0
      %1101 = vperm.xlu0 %1100, %v1061
      %v1102 = vpop.permute.xlu0 %1101
      %v1111 = vunpack.c.l.b16 %v1048
      %v1112 = vunpack.c.l.b16 %v1049
      %v1113 = vunpack.c.l.b16 %v1050
      %v1114 = vunpack.c.l.b16 %v1051
      %v1115 = vunpack.c.l.b16 %v1052
      %v1116 = vunpack.c.l.b16 %v1053
      %v1117 = vunpack.c.l.b16 %v1054
      %v1118 = vpack.c.b16 %v1112, %v1111
      %v1119 = vpack.c.b16 %v1114, %v1113
      %v1120 = vpack.c.b16 %v1116, %v1115
      %v1121 = vpack.c.b16 %v1117, %v1117
      %v1123 = vsel %vm526, %v1118, 0
      %v1126 = vsel %vm526, %v1119, 0
      %v1129 = vsel %vm526, %v1120, 0
      %v1132 = vsel %vm526, %v1121, 0
      %v1135 = vsel %vm530, %v1068, 0
      %1137 = vmatprep.subr.bf16.mxu0 0
      %1138 = vmatpush1.bf16.msra.mxu0 0
      %1139 = vmatprep.subr.bf16.mxu0 0
      %1140 = vmatpush1.bf16.msra.mxu0 %v1135
      %1141 = vmatprep.subr.bf16.mxu0 0
      %1142 = vmatpush1.bf16.msra.mxu0 %v1067
      %1143 = vmatprep.subr.bf16.mxu0 0
      %1144 = vmatpush1.bf16.msra.mxu0 %v1066
      %1145 = vmatprep.subr.bf16.mxu0 0
      %1146 = vmatpush1.bf16.msra.mxu0 %v1065
      %1147 = vmatprep.subr.bf16.mxu0 0
      %1148 = vmatpush1.bf16.msra.mxu0 %v1064
      %1149 = vmatprep.subr.bf16.mxu0 0
      %1150 = vmatpush1.bf16.msra.mxu0 %v1063
      %1151 = vmatprep.subr.bf16.mxu0 0
      %1152 = vmatpush1.bf16.msra.mxu0 %v1062
      %1153 = vmatprep.subr.bf16.mxu0 0
      %1154 = vmatpush2.bf16.msra.mxu0 0
      %1155 = vmatprep.subr.bf16.mxu0 0
      %1156 = vmatpush2.bf16.msra.mxu0 0
      %1157 = vmatprep.subr.bf16.mxu0 0
      %1158 = vmatpush2.bf16.msra.mxu0 0
      %1159 = vmatprep.subr.bf16.mxu0 0
      %1160 = vmatpush2.bf16.msra.mxu0 0
      %1161 = vmatprep.subr.bf16.mxu0 0
      %1162 = vmatpush2.bf16.msra.mxu0 0
      %1163 = vmatprep.subr.bf16.mxu0 0
      %1164 = vmatpush2.bf16.msra.mxu0 0
      %1165 = vmatprep.subr.bf16.mxu0 0
      %1166 = vmatpush2.bf16.msra.mxu0 0
      %1167 = vmatprep.subr.bf16.mxu0 0
      %1168 = vmatpush2.bf16.msra.mxu0 0
      %1169 = vmatprep.mubr.bf16.mxu0 0
      %1170 = vmatmul.mubr.bf16.gmra.mxu0 %v1123
      %v1171 = vpop.f32.mrf.mxu0
      %v1172 = vadd.f32 %v1072, %v1171
      %v1173 = vpop.f32.mrf.mxu0
      %v1174 = vpop.f32.mrf.mxu0
      %v1175 = vadd.f32 %v1077, %v1174
      %v1176 = vpop.f32.mrf.mxu0
      %1177 = vmatprep.mubr.bf16.mxu0 0
      %1178 = vmatmul.mubr.bf16.gmra.mxu0 %v1126
      %v1179 = vpop.f32.mrf.mxu0
      %v1180 = vadd.f32 %v1082, %v1179
      %v1181 = vpop.f32.mrf.mxu0
      %v1182 = vpop.f32.mrf.mxu0
      %v1183 = vadd.f32 %v1087, %v1182
      %v1184 = vpop.f32.mrf.mxu0
      %1185 = vmatprep.mubr.bf16.mxu0 0
      %1186 = vmatmul.mubr.bf16.gmra.mxu0 %v1129
      %v1187 = vpop.f32.mrf.mxu0
      %v1188 = vadd.f32 %v1092, %v1187
      %v1189 = vpop.f32.mrf.mxu0
      %v1190 = vpop.f32.mrf.mxu0
      %v1191 = vadd.f32 %v1097, %v1190
      %v1192 = vpop.f32.mrf.mxu0
      %1193 = vmatprep.mubr.bf16.mxu0 0
      %1194 = vmatmul.mubr.bf16.gmra.mxu0 %v1132
      %v1195 = vpop.f32.mrf.mxu0
      %v1196 = vadd.f32 %v1102, %v1195
      %v1197 = vpop.f32.mrf.mxu0
      %v1198 = vpop.f32.mrf.mxu0
      %v1199 = vpop.f32.mrf.mxu0
      %1200 = vdwg.mxu0
      %v1201 = vmax.f32 %v1172, 0.0
      %v1202 = vmax.f32 %v1175, 0.0
      %v1203 = vmax.f32 %v1180, 0.0
      %v1204 = vmax.f32 %v1183, 0.0
      %v1205 = vmax.f32 %v1188, 0.0
      %v1206 = vmax.f32 %v1191, 0.0
      %v1207 = vmax.f32 %v1196, 0.0
      %v1208 = vld [vmem:[%s9] sm:$0x1]
      %v1209 = vld [vmem:[#allocation2] sm:$0x1]
      %v1210 = vpack.c.bf16 %v1202, %v1201
      %v1211 = vpack.c.bf16 %v1204, %v1203
      %v1212 = vpack.c.bf16 %v1206, %v1205
      %v1213 = vpack.c.bf16 %v1207, %v1207
      %1215 = vset.pattern.permute.xlu0 0
      %1216 = vperm.xlu0 %1215, %v1209
      %v1217 = vpop.permute.xlu0 %1216
      %v1219 = vlaneseq
      %v1220 = vshrl.u32 %v1219, 7
      %v1221 = vsub.s32 0, %v1220
      %v1222 = vrot.slane %v1217, %v1221
      %vm1223 = vcmask 408576
      %v1225 = vsel %vm1223, %v1208, 0
      %vm1227 = vcmask 1040384
      %v1229 = vsel %vm1227, %v1213, 0
      %1231 = vmatprep.subr.bf16.mxu0 0
      %1232 = vmatpush1.bf16.msra.mxu0 0
      %1233 = vmatprep.subr.bf16.mxu0 0
      %1234 = vmatpush1.bf16.msra.mxu0 0
      %1235 = vmatprep.subr.bf16.mxu0 0
      %1236 = vmatpush1.bf16.msra.mxu0 0
      %1237 = vmatprep.subr.bf16.mxu0 0
      %1238 = vmatpush1.bf16.msra.mxu0 0
      %1239 = vmatprep.subr.bf16.mxu0 0
      %1240 = vmatpush1.bf16.msra.mxu0 %v1229
      %1241 = vmatprep.subr.bf16.mxu0 0
      %1242 = vmatpush1.bf16.msra.mxu0 %v1212
      %1243 = vmatprep.subr.bf16.mxu0 0
      %1244 = vmatpush1.bf16.msra.mxu0 %v1211
      %1245 = vmatprep.subr.bf16.mxu0 0
      %1246 = vmatpush1.bf16.msra.mxu0 %v1210
      %1247 = vmatprep.subr.bf16.mxu0 0
      %1248 = vmatpush2.bf16.msra.mxu0 0
      %1249 = vmatprep.subr.bf16.mxu0 0
      %1250 = vmatpush2.bf16.msra.mxu0 0
      %1251 = vmatprep.subr.bf16.mxu0 0
      %1252 = vmatpush2.bf16.msra.mxu0 0
      %1253 = vmatprep.subr.bf16.mxu0 0
      %1254 = vmatpush2.bf16.msra.mxu0 0
      %1255 = vmatprep.subr.bf16.mxu0 0
      %1256 = vmatpush2.bf16.msra.mxu0 0
      %1257 = vmatprep.subr.bf16.mxu0 0
      %1258 = vmatpush2.bf16.msra.mxu0 0
      %1259 = vmatprep.subr.bf16.mxu0 0
      %1260 = vmatpush2.bf16.msra.mxu0 0
      %1261 = vmatprep.subr.bf16.mxu0 0
      %1262 = vmatpush2.bf16.msra.mxu0 0
      %1263 = vmatprep.mubr.bf16.mxu0 0
      %1264 = vmatmul.mubr.bf16.gmra.mxu0 %v1225
      %v1265 = vpop.f32.mrf.mxu0
      %v1266 = vadd.f32 %v1222, %v1265
      %v1267 = vpop.f32.mrf.mxu0
      %v1268 = vpop.f32.mrf.mxu0
      %v1269 = vpop.f32.mrf.mxu0
      %1270 = vdwg.mxu0
      %v1271 = vmax.f32 %v1266, 0.0
      %1272 = vst [vmem:[%s392] sm:$0x1] %v1271
      %p1273 = scmp.lt.s32.totalorder %s24, 1
      %s1274 = scalar_select %p1273, %s24, 1
      %s1275 = scalar_lea.vmem %s11, %s1274
      // Predicated region
      $region65: #{explicit_dlcrs_forward.1} parent=63 // pred_check
        %p1276 = pneg %p283
      $region66: #{explicit_dlcrs_forward.1} parent=63 // pred_check_branch
        %1278 = sbr.rel (%p1276) target = $region68
      $region67: #{explicit_dlcrs_forward.1} parent=63 // pred_region
        _
      $region68: #{explicit_dlcrs_forward.1} parent=63 // pred_fallthru
        _
    $region64: #{explicit_dlcrs_forward.1} parent=5 // pred_fallthru
      _
    %p1279 = scmp.le.s32.totalorder 2, %s19
    // Predicated region
    $region69: #{explicit_dlcrs_forward.1} parent=5 // pred_check
      %p1280 = pneg %p1279
    $region70: #{explicit_dlcrs_forward.1} parent=5 // pred_check_branch
      %1282 = sbr.rel (%p1280) target = $region72
    $region71: #{explicit_dlcrs_forward.1} parent=5 // pred_region
      %s1283 = ssub.s32 %s19, 2
      // Predicated region
      $region73: #{explicit_dlcrs_forward.1} parent=71 // pred_check
        %p1284 = pneg %p289
      $region74: #{explicit_dlcrs_forward.1} parent=71 // pred_check_branch
        %1286 = sbr.rel (%p1284) target = $region76
      $region75: #{explicit_dlcrs_forward.1} parent=71 // pred_region
        %p1287 = scmp.lt.s32.totalorder %s25, 1
        %s1288 = scalar_select %p1287, %s25, 1
        %s1289 = scalar_lea.vmem %s11, %s1288
      $region76: #{explicit_dlcrs_forward.1} parent=71 // pred_fallthru
        _
    $region72: #{explicit_dlcrs_forward.1} parent=5 // pred_fallthru
      _
  $region6: #{explicit_dlcrs_forward.1} parent=0 // loop_footer
    %s23 = sadd.s32 1, %s19
  $region7: #{explicit_dlcrs_forward.1} parent=0 // loop_footer_branch
    %18 = sbr.rel target = $region3
  $region8: #{explicit_dlcrs_forward.1} parent=0 // loop_exit
    _

</llo_original>
